<compile_context>
chip_gen: v7x
topology: tpu7x:2x2x1
jax: 0.10.0
libtpu: 0.0.40
codegen_flags: <defaults>
</compile_context>

<pallas_src>
import functools

import jax
import jax.numpy as jnp
import numpy as np
from jax import lax
from jax.experimental import pallas as pl
from jax.experimental.pallas import tpu as pltpu

EPS = 1e-8


def _round_up(x, m):
    return (x + m - 1) // m * m


def _encoder_image_kernel(x_ref, w_ref, b_ref, o_ref, *, no_imgnorm):
    # x_ref: (tm, img_dim)   [f32 or bf16]
    # w_ref: (embed, img_dim)  PyTorch nn.Linear weight layout [f32 or bf16]
    # b_ref: (1, embed)        f32
    # o_ref: (tm, embed)       output dtype
    x = x_ref[...]
    w = w_ref[...]

    # X @ W^T on the MXU, contracting along img_dim of both operands,
    # accumulating in f32 regardless of input dtype.
    y = lax.dot_general(
        x, w,
        dimension_numbers=(((1,), (1,)), ((), ())),
        preferred_element_type=jnp.float32,
    )
    y = y + b_ref[...].astype(jnp.float32)

    if not no_imgnorm:
        # l2norm: norm = sqrt(sum(y^2, -1)) + eps ; y * (1 / norm)
        ssq = jnp.sum(y * y, axis=-1, keepdims=True)
        norm = jnp.sqrt(ssq) + EPS
        y = y * pl.reciprocal(norm, approx=True)   # EUP reciprocal, per row

    o_ref[...] = y.astype(o_ref.dtype)


def encoder_image_forward(images, weight, bias, *, no_imgnorm=False,
                          tm=None, matmul_dtype=None):
    """images: (B, R, img_dim); weight: (embed, img_dim) [PyTorch layout];
    bias: (embed,).  Returns (B, R, embed).

    matmul_dtype: optionally cast X and W (e.g. jnp.bfloat16) before the MXU;
    accumulation, bias add and the L2 norm always run in f32.
    """
    B, R, img_dim = images.shape
    embed = weight.shape[0]
    out_dtype = images.dtype
    M = B * R

    x2d = images.reshape(M, img_dim)
    w = weight
    if matmul_dtype is not None:
        x2d = x2d.astype(matmul_dtype)
        w = w.astype(matmul_dtype)
    b2d = bias.reshape(1, embed).astype(jnp.float32)

    # Row tile: fill the MXU height (256) when there are enough rows; keep it a
    # multiple of the sublane tile (8 for f32, 16 for bf16).
    sub = 16 if x2d.dtype == jnp.dtype(jnp.bfloat16) else 8
    if tm is None:
        tm = min(256, _round_up(M, sub))
    tm = max(sub, _round_up(tm, sub))

    # Pad rows instead of asserting divisibility; padded rows are sliced off.
    M_pad = _round_up(M, tm)
    if M_pad != M:
        x2d = jnp.pad(x2d, ((0, M_pad - M), (0, 0)))

    grid = (M_pad // tm,)

    # Explicit VMEM budget: double-buffered X / W / bias / out tiles + margin.
    isz_x = jnp.dtype(x2d.dtype).itemsize
    isz_w = jnp.dtype(w.dtype).itemsize
    isz_o = jnp.dtype(out_dtype).itemsize
    vmem_needed = (2 * tm * img_dim * isz_x          # X tiles
                   + 2 * embed * img_dim * isz_w     # weight (grid-invariant)
                   + 2 * embed * 4                   # bias
                   + 2 * tm * embed * isz_o          # output tiles
                   + (2 << 20))                      # headroom
    vmem_limit = int(min(max(vmem_needed, 16 << 20), 64 << 20))

    cost = pl.CostEstimate(
        flops=2 * M_pad * img_dim * embed,
        transcendentals=2 * M_pad,                   # sqrt + reciprocal per row
        bytes_accessed=(M_pad * img_dim * isz_x
                        + embed * img_dim * isz_w
                        + embed * 4
                        + M_pad * embed * isz_o),
    )

    kernel = functools.partial(_encoder_image_kernel, no_imgnorm=no_imgnorm)

    out = pl.pallas_call(
        kernel,
        out_shape=jax.ShapeDtypeStruct((M_pad, embed), out_dtype),
        grid_spec=pltpu.PrefetchScalarGridSpec(
            num_scalar_prefetch=0,
            grid=grid,
            in_specs=[
                pl.BlockSpec((tm, img_dim), lambda i: (i, 0)),
                pl.BlockSpec((embed, img_dim), lambda i: (0, 0)),
                pl.BlockSpec((1, embed), lambda i: (0, 0)),
            ],
            out_specs=pl.BlockSpec((tm, embed), lambda i: (i, 0)),
        ),
        compiler_params=pltpu.CompilerParams(
            dimension_semantics=("parallel",),
            vmem_limit_bytes=vmem_limit,
        ),
        cost_estimate=cost,
    )(x2d, w, b2d)

    if M_pad != M:
        out = out[:M]
    return out.reshape(B, R, embed)


def init_encoder_image_params(key, img_dim, embed_size):
    """Xavier-uniform weight (embed_size, img_dim), zero bias — matches
    EncoderImage.init_weights()."""
    r = np.sqrt(6.0) / np.sqrt(img_dim + embed_size)
    weight = jax.random.uniform(
        key, (embed_size, img_dim), dtype=jnp.float32, minval=-r, maxval=r)
    bias = jnp.zeros((embed_size,), dtype=jnp.float32)
    return weight, bias


def _reference(images, weight, bias, *, no_imgnorm=False):
    y = jnp.einsum("brd,ed->bre", images, weight) + bias
    if no_imgnorm:
        return y
    norm = jnp.sqrt(jnp.sum(y * y, axis=-1, keepdims=True)) + EPS
    return y / norm


if __name__ == "__main__":
    # Small shapes consistent with the module (real model: R=36, 2048 -> 1024),
    # but lane-aligned (multiples of 128 on the feature axes).
    batch, n_regions, img_dim, embed_size = 2, 8, 256, 128

    key = jax.random.PRNGKey(0)
    k_img, k_w = jax.random.split(key)

    images = jax.random.normal(
        k_img, (batch, n_regions, img_dim), dtype=jnp.float32)
    weight, bias = init_encoder_image_params(k_w, img_dim, embed_size)

    ref = _reference(images, weight, bias)

    # 1) f32 MXU path (default).
    out = jax.block_until_ready(encoder_image_forward(images, weight, bias))
    np.testing.assert_allclose(np.asarray(out), np.asarray(ref),
                               rtol=2e-3, atol=2e-3)

    # 2) bf16 MXU fast path (v6e/v7x); accumulation + norm still f32.
    out_bf16 = jax.block_until_ready(
        encoder_image_forward(images, weight, bias,
                              matmul_dtype=jnp.bfloat16))
    np.testing.assert_allclose(np.asarray(out_bf16), np.asarray(ref),
                               rtol=3e-2, atol=3e-2)

    # 3) no_imgnorm path (skip the L2 normalization).
    out_nonorm = jax.block_until_ready(
        encoder_image_forward(images, weight, bias, no_imgnorm=True))
    ref_nonorm = _reference(images, weight, bias, no_imgnorm=True)
    np.testing.assert_allclose(np.asarray(out_nonorm), np.asarray(ref_nonorm),
                               rtol=1e-4, atol=1e-4)

    print("KERNEL_OK")
</pallas_src>

<mosaic_0001>
module attributes {stable_mosaic.version = 11 : i64} {
  func.func @_encoder_image_kernel(%arg0: i32, %arg1: memref<16x256xf32, #tpu.memory_space<vmem>>, %arg2: memref<128x256xf32, #tpu.memory_space<vmem>>, %arg3: memref<1x128xf32, #tpu.memory_space<vmem>>, %arg4: memref<16x128xf32, #tpu.memory_space<vmem>>) attributes {dimension_semantics = [#tpu.dimension_semantics<parallel>], iteration_bounds = array<i64: 1>, scalar_prefetch = 0 : i64, scratch_operands = 0 : i64, tpu.core_type = #tpu.core_type<tc>, window_params = [{transform_indices = @transform_0, window_bounds = array<i64: 16, 256>}, {pipeline_mode = #tpu.pipeline_mode<synchronous>, transform_indices = @transform_1, window_bounds = array<i64: 128, 256>}, {pipeline_mode = #tpu.pipeline_mode<synchronous>, transform_indices = @transform_2, window_bounds = array<i64: 1, 128>}, {transform_indices = @transform_3, window_bounds = array<i64: 16, 128>}]} {
    %c0 = arith.constant 0 : index
    %c0_0 = arith.constant 0 : index
    %0 = vector.load %arg1[%c0, %c0_0] : memref<16x256xf32, #tpu.memory_space<vmem>>, vector<16x256xf32>
    %c0_1 = arith.constant 0 : index
    %c0_2 = arith.constant 0 : index
    %1 = vector.load %arg2[%c0_1, %c0_2] : memref<128x256xf32, #tpu.memory_space<vmem>>, vector<128x256xf32>
    %cst = arith.constant dense<0.000000e+00> : vector<16x128xf32>
    %2 = tpu.matmul %0, %1, %cst {dimension_numbers = #tpu.dot_dimension_numbers<[1], [1], [0], [0], [0, 0, 1, 0], [], []>} : vector<16x256xf32>, vector<128x256xf32>, vector<16x128xf32> -> vector<16x128xf32>
    %c0_3 = arith.constant 0 : index
    %c0_4 = arith.constant 0 : index
    %3 = vector.load %arg3[%c0_3, %c0_4] : memref<1x128xf32, #tpu.memory_space<vmem>>, vector<1x128xf32>
    %4 = vector.broadcast %3 : vector<1x128xf32> to vector<16x128xf32>
    %5 = arith.addf %2, %4 : vector<16x128xf32>
    %6 = arith.mulf %5, %5 : vector<16x128xf32>
    %cst_5 = arith.constant dense<0.000000e+00> : vector<16xf32>
    %7 = vector.multi_reduction <add>, %6, %cst_5 [1] : vector<16x128xf32> to vector<16xf32>
    %8 = vector.shape_cast %7 : vector<16xf32> to vector<16x1xf32>
    %9 = math.sqrt %8 : vector<16x1xf32>
    %cst_6 = arith.constant 9.99999993E-9 : f32
    %10 = vector.broadcast %cst_6 : f32 to vector<16x1xf32>
    %11 = arith.addf %9, %10 : vector<16x1xf32>
    %12 = tpu.reciprocal %11 {approx = true} : vector<16x1xf32> -> vector<16x1xf32>
    %13 = vector.broadcast %12 : vector<16x1xf32> to vector<16x128xf32>
    %14 = arith.mulf %5, %13 : vector<16x128xf32>
    %c0_7 = arith.constant 0 : index
    %c0_8 = arith.constant 0 : index
    %15 = vector.load %arg4[%c0_7, %c0_8] : memref<16x128xf32, #tpu.memory_space<vmem>>, vector<16x128xf32>
    tpu.vector_store %arg4[%c0_7, %c0_8], %14 {strides = array<i32>} : memref<16x128xf32, #tpu.memory_space<vmem>>, vector<16x128xf32>,
    return
  }
  func.func @transform_0(%arg0: i32) -> (i32, i32) {
    %c0_i32 = arith.constant 0 : i32
    %c0_i32_0 = arith.constant 0 : i32
    return %arg0, %c0_i32 : i32, i32
  }
  func.func @transform_1(%arg0: i32) -> (i32, i32) {
    %c0_i32 = arith.constant 0 : i32
    %c0_i32_0 = arith.constant 0 : i32
    %c0_i32_1 = arith.constant 0 : i32
    return %c0_i32, %c0_i32_0 : i32, i32
  }
  func.func @transform_2(%arg0: i32) -> (i32, i32) {
    %c0_i32 = arith.constant 0 : i32
    %c0_i32_0 = arith.constant 0 : i32
    %c0_i32_1 = arith.constant 0 : i32
    return %c0_i32, %c0_i32_0 : i32, i32
  }
  func.func @transform_3(%arg0: i32) -> (i32, i32) {
    %c0_i32 = arith.constant 0 : i32
    %c0_i32_0 = arith.constant 0 : i32
    return %arg0, %c0_i32 : i32, i32
  }
}

</mosaic_0001>

<llo_original>
// kernel: tpu_custom_call.1
$region0: #{tpu_custom_call.1}
  #allocation0 [shape = 'u32[]', space=smem, size = 0x4, offset = 0x4, fixed_abs, tag = 'smem constant byte address 0x4 - core index']
  #allocation1 [shape = 'u32[144,128]{1,0:T(1,128)}', space=vmem, size = 0x12000, scoped, tag = 'internal scratch']
  %s0 = inlined_call_operand.hbm [shape: f32[16,256], index: 0, kind: input, shape index: {}]
  %s1 = inlined_call_operand.hbm [shape: f32[128,256], index: 1, kind: input, shape index: {}]
  %s2 = inlined_call_operand.vmem [shape: f32[1,128], index: 2, kind: input, shape index: {}]
  %s3 = inlined_call_operand.hbm [shape: f32[16,128], index: 3, kind: output, shape index: {}]
  %s4 = sld [smem:[#allocation0]]
  $region30: #{tpu_custom_call.1} parent=0
    _
  %s6 = ssub.s32 1, %s4
  %s7 = scalar_select 0, %s6, %s4
  $region1: #{tpu_custom_call.1} parent=0
    #allocation2 [shape = 'u8[16384]{0}', space=vmem, size = 0x4000, scoped, tag = 'input window, operand 0, single buffered']
    #allocation3 [shape = 's32[1]{0}', space=sflag, size = 0x4, scoped, tag = 'scoped memory for tpu_custom_call.1']
    #allocation4 [shape = 's32[1]{0}', space=sflag, size = 0x4, scoped, tag = 'scoped memory for tpu_custom_call.1']
    #allocation5 [shape = 'u8[131072]{0}', space=vmem, size = 0x20000, scoped, tag = 'input window, operand 1, single buffered']
    #allocation6 [shape = 's32[1]{0}', space=sflag, size = 0x4, scoped, tag = 'scoped memory for tpu_custom_call.1']
    #allocation7 [shape = 'u8[8192]{0}', space=vmem, size = 0x2000, scoped, tag = 'output window, operand 0, single buffered']
    %8 = vsyncpa [#allocation3], 0
    %9 = vsyncpa [#allocation6], 0
    %10 = vsyncpa [#allocation4], 0
    // Predicated region
    $region2: #{tpu_custom_call.1} parent=1 // pred_check
      _
    $region3: #{tpu_custom_call.1} parent=1 // pred_check_branch
      %12 = sbr.rel (0) target = $region5
    $region4: #{tpu_custom_call.1} parent=1 // pred_region
      %s14 = ssub.s32 512, 512
      %15 = vsyncadd [#allocation3], %s14
      %s16 = sshll.u32 [#allocation2], 4
      %s17 = int_to_ptr.vmem [resolvable:$true] %s16
      %22 = dma.hbm_to_vmem [thread:$0]  %s0, 512, %s17, [#allocation3], 256, 256, 16
    $region5: #{tpu_custom_call.1} parent=1 // pred_fallthru
      _
    // Predicated region
    $region6: #{tpu_custom_call.1} parent=1 // pred_check
      _
    $region7: #{tpu_custom_call.1} parent=1 // pred_check_branch
      %24 = sbr.rel (0) target = $region9
    $region8: #{tpu_custom_call.1} parent=1 // pred_region
      %s26 = ssub.s32 4096, 4096
      %27 = vsyncadd [#allocation6], %s26
      %s28 = sshll.u32 [#allocation5], 4
      %s29 = int_to_ptr.vmem [resolvable:$true] %s28
      %34 = dma.hbm_to_vmem [thread:$0]  %s1, 4096, %s29, [#allocation6], 256, 256, 16
    $region9: #{tpu_custom_call.1} parent=1 // pred_fallthru
      _
    // Predicated region
    $region10: #{tpu_custom_call.1} parent=1 // pred_check
      _
    $region11: #{tpu_custom_call.1} parent=1 // pred_check_branch
      %36 = sbr.rel (0) target = $region13
    $region12: #{tpu_custom_call.1} parent=1 // pred_region
      _
    $region13: #{tpu_custom_call.1} parent=1 // pred_fallthru
      _
    // Predicated region
    $region14: #{tpu_custom_call.1} parent=1 // pred_check
      _
    $region15: #{tpu_custom_call.1} parent=1 // pred_check_branch
      %38 = sbr.rel (0) target = $region17
    $region16: #{tpu_custom_call.1} parent=1 // pred_region
      %39 = dma.done [#allocation3], 512
    $region17: #{tpu_custom_call.1} parent=1 // pred_fallthru
      _
    // Predicated region
    $region18: #{tpu_custom_call.1} parent=1 // pred_check
      _
    $region19: #{tpu_custom_call.1} parent=1 // pred_check_branch
      %41 = sbr.rel (0) target = $region21
    $region20: #{tpu_custom_call.1} parent=1 // pred_region
      %42 = dma.done [#allocation6], 4096
    $region21: #{tpu_custom_call.1} parent=1 // pred_fallthru
      _
    %v43 = vld [vmem:[#allocation2] sm:$0xff]
    %v44 = vld [vmem:[#allocation2 + $0x8] sm:$0xff]
    %v45 = vld [vmem:[#allocation2 + $0x10] sm:$0xff]
    %v46 = vld [vmem:[#allocation2 + $0x18] sm:$0xff]
    %v47 = vld [vmem:[#allocation5] sm:$0xff]
    %v48 = vld [vmem:[#allocation5 + $0x8] sm:$0xff]
    %v49 = vld [vmem:[#allocation5 + $0x10] sm:$0xff]
    %v50 = vld [vmem:[#allocation5 + $0x18] sm:$0xff]
    %v51 = vld [vmem:[#allocation5 + $0x20] sm:$0xff]
    %v52 = vld [vmem:[#allocation5 + $0x28] sm:$0xff]
    %v53 = vld [vmem:[#allocation5 + $0x30] sm:$0xff]
    %v54 = vld [vmem:[#allocation5 + $0x38] sm:$0xff]
    %v55 = vld [vmem:[#allocation5 + $0x40] sm:$0xff]
    %v56 = vld [vmem:[#allocation5 + $0x48] sm:$0xff]
    %v57 = vld [vmem:[#allocation5 + $0x50] sm:$0xff]
    %v58 = vld [vmem:[#allocation5 + $0x58] sm:$0xff]
    %v59 = vld [vmem:[#allocation5 + $0x60] sm:$0xff]
    %v60 = vld [vmem:[#allocation5 + $0x68] sm:$0xff]
    %v61 = vld [vmem:[#allocation5 + $0x70] sm:$0xff]
    %v62 = vld [vmem:[#allocation5 + $0x78] sm:$0xff]
    %v63 = vld [vmem:[#allocation5 + $0x80] sm:$0xff]
    %v64 = vld [vmem:[#allocation5 + $0x88] sm:$0xff]
    %v65 = vld [vmem:[#allocation5 + $0x90] sm:$0xff]
    %v66 = vld [vmem:[#allocation5 + $0x98] sm:$0xff]
    %v67 = vld [vmem:[#allocation5 + $0xa0] sm:$0xff]
    %v68 = vld [vmem:[#allocation5 + $0xa8] sm:$0xff]
    %v69 = vld [vmem:[#allocation5 + $0xb0] sm:$0xff]
    %v70 = vld [vmem:[#allocation5 + $0xb8] sm:$0xff]
    %v71 = vld [vmem:[#allocation5 + $0xc0] sm:$0xff]
    %v72 = vld [vmem:[#allocation5 + $0xc8] sm:$0xff]
    %v73 = vld [vmem:[#allocation5 + $0xd0] sm:$0xff]
    %v74 = vld [vmem:[#allocation5 + $0xd8] sm:$0xff]
    %v75 = vld [vmem:[#allocation5 + $0xe0] sm:$0xff]
    %v76 = vld [vmem:[#allocation5 + $0xe8] sm:$0xff]
    %v77 = vld [vmem:[#allocation5 + $0xf0] sm:$0xff]
    %v78 = vld [vmem:[#allocation5 + $0xf8] sm:$0xff]
    %v79 = vld [vmem:[%s2] sm:$0x1]
    %v81 = vlaneseq
    %v82 = vshrl.u32 %v81, 7
    %v83 = vsub.s32 0, %v82
    %v84 = vrot.slane %v79, %v83
    %86 = vmatprep.subr.mxu0 %v48
    %87 = vmatpush1.xpose.msra.mxu0 %v47
    %88 = vmatprep.subr.mxu0 %v50
    %89 = vmatpush1.xpose.msra.mxu0 %v49
    %90 = vmatprep.subr.mxu0 %v52
    %91 = vmatpush1.xpose.msra.mxu0 %v51
    %92 = vmatprep.subr.mxu0 %v54
    %93 = vmatpush1.xpose.msra.mxu0 %v53
    %94 = vmatprep.subr.mxu0 %v56
    %95 = vmatpush1.xpose.msra.mxu0 %v55
    %96 = vmatprep.subr.mxu0 %v58
    %97 = vmatpush1.xpose.msra.mxu0 %v57
    %98 = vmatprep.subr.mxu0 %v60
    %99 = vmatpush1.xpose.msra.mxu0 %v59
    %100 = vmatprep.subr.mxu0 %v62
    %101 = vmatpush1.xpose.msra.mxu0 %v61
    %102 = vmatprep.subr.mxu0 %v64
    %103 = vmatpush1.xpose.msra.mxu0 %v63
    %104 = vmatprep.subr.mxu0 %v66
    %105 = vmatpush1.xpose.msra.mxu0 %v65
    %106 = vmatprep.subr.mxu0 %v68
    %107 = vmatpush1.xpose.msra.mxu0 %v67
    %108 = vmatprep.subr.mxu0 %v70
    %109 = vmatpush1.xpose.msra.mxu0 %v69
    %110 = vmatprep.subr.mxu0 %v72
    %111 = vmatpush1.xpose.msra.mxu0 %v71
    %112 = vmatprep.subr.mxu0 %v74
    %113 = vmatpush1.xpose.msra.mxu0 %v73
    %114 = vmatprep.subr.mxu0 %v76
    %115 = vmatpush1.xpose.msra.mxu0 %v75
    %116 = vmatprep.subr.mxu0 %v78
    %117 = vmatpush1.xpose.msra.mxu0 %v77
    %118 = vmatprep.subr.mxu0 0.0
    %119 = vmatpush1.xpose.msra.mxu0 0.0
    %120 = vmatprep.subr.mxu0 0.0
    %121 = vmatpush1.xpose.msra.mxu0 0.0
    %122 = vmatprep.subr.mxu0 0.0
    %123 = vmatpush1.xpose.msra.mxu0 0.0
    %124 = vmatprep.subr.mxu0 0.0
    %125 = vmatpush1.xpose.msra.mxu0 0.0
    %126 = vmatprep.subr.mxu0 0.0
    %127 = vmatpush1.xpose.msra.mxu0 0.0
    %128 = vmatprep.subr.mxu0 0.0
    %129 = vmatpush1.xpose.msra.mxu0 0.0
    %130 = vmatprep.subr.mxu0 0.0
    %131 = vmatpush1.xpose.msra.mxu0 0.0
    %132 = vmatprep.subr.mxu0 0.0
    %133 = vmatpush1.xpose.msra.mxu0 0.0
    %134 = vmatprep.subr.mxu0 0.0
    %135 = vmatpush1.xpose.msra.mxu0 0.0
    %136 = vmatprep.subr.mxu0 0.0
    %137 = vmatpush1.xpose.msra.mxu0 0.0
    %138 = vmatprep.subr.mxu0 0.0
    %139 = vmatpush1.xpose.msra.mxu0 0.0
    %140 = vmatprep.subr.mxu0 0.0
    %141 = vmatpush1.xpose.msra.mxu0 0.0
    %142 = vmatprep.subr.mxu0 0.0
    %143 = vmatpush1.xpose.msra.mxu0 0.0
    %144 = vmatprep.subr.mxu0 0.0
    %145 = vmatpush1.xpose.msra.mxu0 0.0
    %146 = vmatprep.subr.mxu0 0.0
    %147 = vmatpush1.xpose.msra.mxu0 0.0
    %148 = vmatprep.subr.mxu0 0.0
    %149 = vmatpush1.xpose.msra.mxu0 0.0
    %150 = vmatprep.mubr.f32.mxu0 %v44
    %151 = vmatmul.mubr.f32.gmra.mrb[0].mxu0 %v43
    %v152 = vpop.f32.mrb[0].mxu0
    %v153 = vadd.f32 %v84, %v152
    %v154 = vpop.f32.mrb[0].mxu0
    %155 = vmatprep.mubr.f32.mxu0 %v46
    %156 = vmatmul.mubr.f32.gmra.mrb[0].mxu0 %v45
    %v157 = vpop.f32.mrb[0].mxu0
    %v158 = vadd.f32 %v84, %v157
    %v159 = vpop.f32.mrb[0].mxu0
    %160 = vdwg.mxu0
    %v161 = vmul.f32 %v153, %v153
    %v162 = vmul.f32 %v158, %v158
    %163 = vadd.xlane.f32.xlu0 %v161
    %v164 = vpop.xlane.xlu0 %163
    %165 = vadd.xlane.f32.xlu0 %v162
    %v166 = vpop.xlane.xlu0 %165
    %v167 = vrsqrt.pop %v164
    %v168 = vmul.f32 %v164, %v167
    %vm169 = vcmp.eq.f32.partialorder %v164, inf
    %v170 = vsel %vm169, %v164, %v168
    %vm171 = vcmp.eq.f32.partialorder %v164, 0.0
    %v172 = vand.u32 %v164, 2147483648
    %v173 = vsel %vm171, %v172, %v170
    %v174 = vrsqrt.pop %v166
    %v175 = vmul.f32 %v166, %v174
    %vm176 = vcmp.eq.f32.partialorder %v166, inf
    %v177 = vsel %vm176, %v166, %v175
    %vm178 = vcmp.eq.f32.partialorder %v166, 0.0
    %v179 = vand.u32 %v166, 2147483648
    %v180 = vsel %vm178, %v179, %v177
    %v181 = vadd.f32 %v173, 1e-08
    %v182 = vadd.f32 %v180, 1e-08
    %v183 = vrcp.pop %v181
    %v184 = vrcp.pop %v182
    %v185 = vmul.f32 %v153, %v183
    %v186 = vmul.f32 %v158, %v184
    %187 = vst [vmem:[#allocation7] sm:$0xff] %v185
    %188 = vst [vmem:[#allocation7 + $0x8] sm:$0xff] %v186
    // Predicated region
    $region22: #{tpu_custom_call.1} parent=1 // pred_check
      _
    $region23: #{tpu_custom_call.1} parent=1 // pred_check_branch
      %190 = sbr.rel (0) target = $region25
    $region24: #{tpu_custom_call.1} parent=1 // pred_region
      %s192 = ssub.s32 256, 256
      %193 = vsyncadd [#allocation4], %s192
      %s194 = sshll.u32 [#allocation7], 4
      %s195 = int_to_ptr.vmem [resolvable:$true] %s194
      %200 = dma.vmem_to_hbm [thread:$0]  %s195, 256, %s3, [#allocation4], 128, 128, 8
    $region25: #{tpu_custom_call.1} parent=1 // pred_fallthru
      _
    // Predicated region
    $region26: #{tpu_custom_call.1} parent=1 // pred_check
      _
    $region27: #{tpu_custom_call.1} parent=1 // pred_check_branch
      %202 = sbr.rel (0) target = $region29
    $region28: #{tpu_custom_call.1} parent=1 // pred_region
      %203 = dma.done [#allocation4], 256
    $region29: #{tpu_custom_call.1} parent=1 // pred_fallthru
      _
    %204 = vsyncpa [#allocation3], 1
    %205 = vsyncpa [#allocation6], 1
    %206 = vsyncpa [#allocation4], 1

</llo_original>
